<compile_context>
chip_gen: v7x
topology: tpu7x:2x2x1
jax: 0.10.0
libtpu: 0.0.40
codegen_flags: <defaults>
</compile_context>

<pallas_src>
import functools

import jax
import jax.numpy as jnp
from jax.experimental import pallas as pl
from jax.experimental.pallas import tpu as pltpu


_NEG_BIG = -1e30  # bias fill for padded logit lanes; exp underflows to exactly 0.0


def _round_up(n, m):
    return ((n + m - 1) // m) * m


def _cdiv(a, b):
    return -(-a // b)


def _mlp_softmax_kernel(x_ref, w1_ref, b1_ref, w2_ref, b2_ref, w3_ref, b3_ref,
                        o_ref, *, g_out):
    # x_ref: (TB, 127) f32 streamed tile; cast to bf16 in-kernel (VPU slack).
    x = x_ref[...].astype(jnp.bfloat16)

    # dense1 + ReLU : (TB,127) @ (127,128) -> (TB,128), f32 MXU accumulation.
    h1 = jnp.dot(x, w1_ref[...], preferred_element_type=jnp.float32)
    h1 = jnp.maximum(h1 + b1_ref[...], 0.0).astype(jnp.bfloat16)

    # dense2 + ReLU : (TB,128) @ (128,64) -> (TB,64).
    h2 = jnp.dot(h1, w2_ref[...], preferred_element_type=jnp.float32)
    h2 = jnp.maximum(h2 + b2_ref[...], 0.0).astype(jnp.bfloat16)

    # dense3 : (TB,64) @ (64,G_pad) -> (TB,G_pad). Padded lanes have zero
    # weights and a very negative bias, so exp() makes them exactly 0.
    logits = jnp.dot(h2, w3_ref[...], preferred_element_type=jnp.float32)
    logits = logits + b3_ref[...]

    # Numerically stable softmax over dim=1 (lane axis), exact normalization.
    m = jnp.max(logits, axis=1, keepdims=True)
    e = jnp.exp(logits - m)
    denom = jnp.sum(e, axis=1, keepdims=True)
    o_ref[...] = (e[:, :g_out] / denom).astype(o_ref.dtype)


def gr_model_forward(x, params, *, block_batch=1024):
    """Fused MLP (127->128->64->G) + softmax, batch-tiled Pallas kernel."""
    w1, b1, w2, b2, w3, b3 = params
    batch, in_features = x.shape
    gesture_count = w3.shape[1]

    # Logits computed over a 128-lane padded slab (MXU lane granule); only the
    # first `gesture_count` lanes are stored.
    g_pad = _round_up(max(gesture_count, 128), 128)

    # Batch tile: big enough to amortize the ~0.35us/grid-step overhead; split
    # into >=2 tiles for large batches so both v7x TensorCores get work, and
    # size tiles to minimize batch-padding waste.
    tb = min(block_batch, _round_up(batch, 8))
    if batch > block_batch:
        n_tiles = max(2, _cdiv(batch, block_batch))
        tb = _round_up(_cdiv(batch, n_tiles), 8)
    b_pad = _round_up(batch, tb)

    # x stays in native f32 (batch, 127); only pad rows if the tile demands it.
    x_p = x if b_pad == batch else jnp.pad(x, ((0, b_pad - batch), (0, 0)))
    x_p = x_p.astype(jnp.float32)

    # Small, VMEM-resident weights/biases (cast/pad once per call).
    w1_p = w1.astype(jnp.bfloat16)                                     # (127,128)
    w2_p = w2.astype(jnp.bfloat16)                                     # (128, 64)
    w3_p = jnp.pad(w3, ((0, 0), (0, g_pad - gesture_count))).astype(jnp.bfloat16)
    b1_p = b1.reshape(1, -1).astype(jnp.float32)
    b2_p = b2.reshape(1, -1).astype(jnp.float32)
    b3_p = jnp.pad(b3.reshape(1, -1).astype(jnp.float32),
                   ((0, 0), (0, g_pad - gesture_count)),
                   constant_values=_NEG_BIG)

    grid = (b_pad // tb,)

    def resident(a):  # whole small array, VMEM-resident across all grid steps
        return pl.BlockSpec(a.shape, lambda i: (0,) * a.ndim)

    flops = 2 * b_pad * (in_features * 128 + 128 * 64 + 64 * g_pad)
    bytes_accessed = (x_p.size * 4
                      + (w1_p.size + w2_p.size + w3_p.size) * 2
                      + (b1_p.size + b2_p.size + b3_p.size) * 4
                      + b_pad * gesture_count * 4)

    kernel = functools.partial(_mlp_softmax_kernel, g_out=gesture_count)

    out = pl.pallas_call(
        kernel,
        out_shape=jax.ShapeDtypeStruct((b_pad, gesture_count), jnp.float32),
        grid=grid,
        in_specs=[
            pl.BlockSpec((tb, in_features), lambda i: (i, 0)),  # x streams by tile
            resident(w1_p), resident(b1_p),
            resident(w2_p), resident(b2_p),
            resident(w3_p), resident(b3_p),
        ],
        out_specs=pl.BlockSpec((tb, gesture_count), lambda i: (i, 0)),
        compiler_params=pltpu.CompilerParams(
            dimension_semantics=("parallel",)),
        cost_estimate=pl.CostEstimate(
            flops=flops,
            transcendentals=b_pad * g_pad,
            bytes_accessed=bytes_accessed),
    )(x_p, w1_p, b1_p, w2_p, b2_p, w3_p, b3_p)

    return out if b_pad == batch else out[:batch]


def init_params(key, gesture_count):
    """Deterministic init matching nn.Linear shapes (weights pre-transposed)."""
    k1, k2, k3, k4, k5, k6 = jax.random.split(key, 6)

    def u(k, shape, fan_in):
        bound = 1.0 / (fan_in ** 0.5)
        return jax.random.uniform(k, shape, jnp.float32, -bound, bound)

    w1 = u(k1, (127, 128), 127)
    b1 = u(k2, (1, 128), 127)
    w2 = u(k3, (128, 64), 128)
    b2 = u(k4, (1, 64), 128)
    w3 = u(k5, (64, gesture_count), 64)
    b3 = u(k6, (1, gesture_count), 64)
    return (w1, b1, w2, b2, w3, b3)


def _ref_bf16_path(x, params):
    """Plain-JAX reference replicating the kernel's bf16-matmul math."""
    w1, b1, w2, b2, w3, b3 = params
    xb = x.astype(jnp.bfloat16)
    w1b, w2b, w3b = (w.astype(jnp.bfloat16) for w in (w1, w2, w3))
    h1 = jnp.maximum(
        jnp.dot(xb, w1b, preferred_element_type=jnp.float32) + b1.reshape(1, -1), 0.0)
    h1 = h1.astype(jnp.bfloat16)
    h2 = jnp.maximum(
        jnp.dot(h1, w2b, preferred_element_type=jnp.float32) + b2.reshape(1, -1), 0.0)
    h2 = h2.astype(jnp.bfloat16)
    logits = jnp.dot(h2, w3b, preferred_element_type=jnp.float32) + b3.reshape(1, -1)
    return jax.nn.softmax(logits, axis=1)


if __name__ == "__main__":
    gesture_count = 10
    batch = 8

    key = jax.random.PRNGKey(0)
    kx, kp = jax.random.split(key)
    x = jax.random.normal(kx, (batch, 127), jnp.float32)
    params = init_params(kp, gesture_count)

    fwd = jax.jit(gr_model_forward)
    out = jax.block_until_ready(fwd(x, params))
    assert out.shape == (batch, gesture_count)
    assert bool(jnp.all(jnp.isfinite(out)))

    # Exact in-kernel normalization: rows must sum to 1 (f32 rounding only).
    assert jnp.allclose(jnp.sum(out, axis=1), 1.0, atol=1e-4)

    # Tight check against the same bf16-matmul math path.
    ref_b = _ref_bf16_path(x, params)
    assert jnp.allclose(out, ref_b, atol=2e-3, rtol=2e-3)

    # Looser check against pure-f32 torch semantics.
    w1, b1, w2, b2, w3, b3 = params
    h1 = jnp.maximum(x @ w1 + b1, 0.0)
    h2 = jnp.maximum(h1 @ w2 + b2, 0.0)
    ref_f32 = jax.nn.softmax(h2 @ w3 + b3, axis=1)
    assert jnp.allclose(out, ref_f32, atol=3e-2)

    print("KERNEL_OK")
</pallas_src>

<mosaic_0001>
module attributes {stable_mosaic.version = 11 : i64} {
  func.func @_mlp_softmax_kernel(%arg0: i32, %arg1: memref<8x127xf32, #tpu.memory_space<vmem>>, %arg2: memref<127x128xbf16, #tpu.memory_space<vmem>>, %arg3: memref<1x128xf32, #tpu.memory_space<vmem>>, %arg4: memref<128x64xbf16, #tpu.memory_space<vmem>>, %arg5: memref<1x64xf32, #tpu.memory_space<vmem>>, %arg6: memref<64x128xbf16, #tpu.memory_space<vmem>>, %arg7: memref<1x128xf32, #tpu.memory_space<vmem>>, %arg8: memref<8x10xf32, #tpu.memory_space<vmem>>) attributes {dimension_semantics = [#tpu.dimension_semantics<parallel>], iteration_bounds = array<i64: 1>, scalar_prefetch = 0 : i64, scratch_operands = 0 : i64, tpu.core_type = #tpu.core_type<tc>, window_params = [{transform_indices = @transform_0, window_bounds = array<i64: 8, 127>}, {pipeline_mode = #tpu.pipeline_mode<synchronous>, transform_indices = @transform_1, window_bounds = array<i64: 127, 128>}, {pipeline_mode = #tpu.pipeline_mode<synchronous>, transform_indices = @transform_2, window_bounds = array<i64: 1, 128>}, {pipeline_mode = #tpu.pipeline_mode<synchronous>, transform_indices = @transform_3, window_bounds = array<i64: 128, 64>}, {pipeline_mode = #tpu.pipeline_mode<synchronous>, transform_indices = @transform_4, window_bounds = array<i64: 1, 64>}, {pipeline_mode = #tpu.pipeline_mode<synchronous>, transform_indices = @transform_5, window_bounds = array<i64: 64, 128>}, {pipeline_mode = #tpu.pipeline_mode<synchronous>, transform_indices = @transform_6, window_bounds = array<i64: 1, 128>}, {transform_indices = @transform_7, window_bounds = array<i64: 8, 10>}]} {
    %c0 = arith.constant 0 : index
    %c0_0 = arith.constant 0 : index
    %0 = vector.load %arg1[%c0, %c0_0] : memref<8x127xf32, #tpu.memory_space<vmem>>, vector<8x127xf32>
    %1 = arith.truncf %0 : vector<8x127xf32> to vector<8x127xbf16>
    %c0_1 = arith.constant 0 : index
    %c0_2 = arith.constant 0 : index
    %2 = vector.load %arg2[%c0_1, %c0_2] : memref<127x128xbf16, #tpu.memory_space<vmem>>, vector<127x128xbf16>
    %cst = arith.constant dense<0.000000e+00> : vector<8x128xf32>
    %3 = tpu.matmul %1, %2, %cst {dimension_numbers = #tpu.dot_dimension_numbers<[1], [0], [0], [1], [0, 0, 1, 1], [], []>} : vector<8x127xbf16>, vector<127x128xbf16>, vector<8x128xf32> -> vector<8x128xf32>
    %c0_3 = arith.constant 0 : index
    %c0_4 = arith.constant 0 : index
    %4 = vector.load %arg3[%c0_3, %c0_4] : memref<1x128xf32, #tpu.memory_space<vmem>>, vector<1x128xf32>
    %5 = vector.broadcast %4 : vector<1x128xf32> to vector<8x128xf32>
    %6 = arith.addf %3, %5 : vector<8x128xf32>
    %cst_5 = arith.constant 0.000000e+00 : f32
    %7 = vector.broadcast %cst_5 : f32 to vector<8x128xf32>
    %8 = arith.maximumf %6, %7 : vector<8x128xf32>
    %9 = arith.truncf %8 : vector<8x128xf32> to vector<8x128xbf16>
    %c0_6 = arith.constant 0 : index
    %c0_7 = arith.constant 0 : index
    %10 = vector.load %arg4[%c0_6, %c0_7] : memref<128x64xbf16, #tpu.memory_space<vmem>>, vector<128x64xbf16>
    %cst_8 = arith.constant dense<0.000000e+00> : vector<8x64xf32>
    %11 = tpu.matmul %9, %10, %cst_8 {dimension_numbers = #tpu.dot_dimension_numbers<[1], [0], [0], [1], [0, 0, 1, 1], [], []>} : vector<8x128xbf16>, vector<128x64xbf16>, vector<8x64xf32> -> vector<8x64xf32>
    %c0_9 = arith.constant 0 : index
    %c0_10 = arith.constant 0 : index
    %12 = vector.load %arg5[%c0_9, %c0_10] : memref<1x64xf32, #tpu.memory_space<vmem>>, vector<1x64xf32>
    %13 = vector.broadcast %12 : vector<1x64xf32> to vector<8x64xf32>
    %14 = arith.addf %11, %13 : vector<8x64xf32>
    %cst_11 = arith.constant 0.000000e+00 : f32
    %15 = vector.broadcast %cst_11 : f32 to vector<8x64xf32>
    %16 = arith.maximumf %14, %15 : vector<8x64xf32>
    %17 = arith.truncf %16 : vector<8x64xf32> to vector<8x64xbf16>
    %c0_12 = arith.constant 0 : index
    %c0_13 = arith.constant 0 : index
    %18 = vector.load %arg6[%c0_12, %c0_13] : memref<64x128xbf16, #tpu.memory_space<vmem>>, vector<64x128xbf16>
    %cst_14 = arith.constant dense<0.000000e+00> : vector<8x128xf32>
    %19 = tpu.matmul %17, %18, %cst_14 {dimension_numbers = #tpu.dot_dimension_numbers<[1], [0], [0], [1], [0, 0, 1, 1], [], []>} : vector<8x64xbf16>, vector<64x128xbf16>, vector<8x128xf32> -> vector<8x128xf32>
    %c0_15 = arith.constant 0 : index
    %c0_16 = arith.constant 0 : index
    %20 = vector.load %arg7[%c0_15, %c0_16] : memref<1x128xf32, #tpu.memory_space<vmem>>, vector<1x128xf32>
    %21 = vector.broadcast %20 : vector<1x128xf32> to vector<8x128xf32>
    %22 = arith.addf %19, %21 : vector<8x128xf32>
    %cst_17 = arith.constant dense<0xFF800000> : vector<8xf32>
    %23 = vector.multi_reduction <maximumf>, %22, %cst_17 [1] : vector<8x128xf32> to vector<8xf32>
    %24 = vector.shape_cast %23 : vector<8xf32> to vector<8x1xf32>
    %25 = vector.broadcast %24 : vector<8x1xf32> to vector<8x128xf32>
    %26 = arith.subf %22, %25 : vector<8x128xf32>
    %27 = math.exp %26 : vector<8x128xf32>
    %cst_18 = arith.constant dense<0.000000e+00> : vector<8xf32>
    %28 = vector.multi_reduction <add>, %27, %cst_18 [1] : vector<8x128xf32> to vector<8xf32>
    %29 = vector.shape_cast %28 : vector<8xf32> to vector<8x1xf32>
    %30 = vector.extract_strided_slice %27 {offsets = [0, 0], sizes = [8, 10], strides = [1, 1]} : vector<8x128xf32> to vector<8x10xf32>
    %31 = vector.broadcast %29 : vector<8x1xf32> to vector<8x10xf32>
    %32 = arith.divf %30, %31 : vector<8x10xf32>
    %c0_19 = arith.constant 0 : index
    %c0_20 = arith.constant 0 : index
    %33 = vector.load %arg8[%c0_19, %c0_20] : memref<8x10xf32, #tpu.memory_space<vmem>>, vector<8x10xf32>
    tpu.vector_store %arg8[%c0_19, %c0_20], %32 {strides = array<i32>} : memref<8x10xf32, #tpu.memory_space<vmem>>, vector<8x10xf32>,
    return
  }
  func.func @transform_0(%arg0: i32) -> (i32, i32) {
    %c0_i32 = arith.constant 0 : i32
    %c0_i32_0 = arith.constant 0 : i32
    return %arg0, %c0_i32 : i32, i32
  }
  func.func @transform_1(%arg0: i32) -> (i32, i32) {
    %c0_i32 = arith.constant 0 : i32
    %c0_i32_0 = arith.constant 0 : i32
    %c0_i32_1 = arith.constant 0 : i32
    return %c0_i32, %c0_i32_0 : i32, i32
  }
  func.func @transform_2(%arg0: i32) -> (i32, i32) {
    %c0_i32 = arith.constant 0 : i32
    %c0_i32_0 = arith.constant 0 : i32
    %c0_i32_1 = arith.constant 0 : i32
    return %c0_i32, %c0_i32_0 : i32, i32
  }
  func.func @transform_3(%arg0: i32) -> (i32, i32) {
    %c0_i32 = arith.constant 0 : i32
    %c0_i32_0 = arith.constant 0 : i32
    %c0_i32_1 = arith.constant 0 : i32
    return %c0_i32, %c0_i32_0 : i32, i32
  }
  func.func @transform_4(%arg0: i32) -> (i32, i32) {
    %c0_i32 = arith.constant 0 : i32
    %c0_i32_0 = arith.constant 0 : i32
    %c0_i32_1 = arith.constant 0 : i32
    return %c0_i32, %c0_i32_0 : i32, i32
  }
  func.func @transform_5(%arg0: i32) -> (i32, i32) {
    %c0_i32 = arith.constant 0 : i32
    %c0_i32_0 = arith.constant 0 : i32
    %c0_i32_1 = arith.constant 0 : i32
    return %c0_i32, %c0_i32_0 : i32, i32
  }
  func.func @transform_6(%arg0: i32) -> (i32, i32) {
    %c0_i32 = arith.constant 0 : i32
    %c0_i32_0 = arith.constant 0 : i32
    %c0_i32_1 = arith.constant 0 : i32
    return %c0_i32, %c0_i32_0 : i32, i32
  }
  func.func @transform_7(%arg0: i32) -> (i32, i32) {
    %c0_i32 = arith.constant 0 : i32
    %c0_i32_0 = arith.constant 0 : i32
    return %arg0, %c0_i32 : i32, i32
  }
}

</mosaic_0001>

<llo_original>
// kernel: gr_model_forward.1
$region0: #{gr_model_forward.1}
  #allocation0 [shape = 'u32[]', space=smem, size = 0x4, offset = 0x4, fixed_abs, tag = 'smem constant byte address 0x4 - core index']
  #allocation1 [shape = 'u32[144,128]{1,0:T(1,128)}', space=vmem, size = 0x12000, scoped, tag = 'internal scratch']
  %s0 = inlined_call_operand.vmem [shape: f32[8,127], index: 0, kind: input, shape index: {}]
  %s1 = inlined_call_operand.vmem [shape: bf16[127,128], index: 1, kind: input, shape index: {}]
  %s2 = inlined_call_operand.vmem [shape: f32[1,128], index: 2, kind: input, shape index: {}]
  %s3 = inlined_call_operand.vmem [shape: bf16[128,64], index: 3, kind: input, shape index: {}]
  %s4 = inlined_call_operand.vmem [shape: f32[1,64], index: 4, kind: input, shape index: {}]
  %s5 = inlined_call_operand.vmem [shape: bf16[64,128], index: 5, kind: input, shape index: {}]
  %s6 = inlined_call_operand.vmem [shape: f32[1,128], index: 6, kind: input, shape index: {}]
  %s7 = inlined_call_operand.hbm [shape: f32[8,10], index: 7, kind: output, shape index: {}]
  %s8 = sld [smem:[#allocation0]]
  $region38: #{gr_model_forward.1} parent=0
    _
  %s10 = ssub.s32 1, %s8
  %s11 = scalar_select 0, %s10, %s8
  $region1: #{gr_model_forward.1} parent=0
    #allocation2 [shape = 'u8[4096]{0}', space=vmem, size = 0x1000, scoped, tag = 'output window, operand 0, single buffered']
    #allocation3 [shape = 's32[1]{0}', space=sflag, size = 0x4, scoped, tag = 'scoped memory for gr_model_forward.1']
    %12 = vsyncpa [#allocation3], 0
    // Predicated region
    $region2: #{gr_model_forward.1} parent=1 // pred_check
      _
    $region3: #{gr_model_forward.1} parent=1 // pred_check_branch
      %14 = sbr.rel (0) target = $region5
    $region4: #{gr_model_forward.1} parent=1 // pred_region
      _
    $region5: #{gr_model_forward.1} parent=1 // pred_fallthru
      _
    // Predicated region
    $region6: #{gr_model_forward.1} parent=1 // pred_check
      _
    $region7: #{gr_model_forward.1} parent=1 // pred_check_branch
      %16 = sbr.rel (0) target = $region9
    $region8: #{gr_model_forward.1} parent=1 // pred_region
      _
    $region9: #{gr_model_forward.1} parent=1 // pred_fallthru
      _
    // Predicated region
    $region10: #{gr_model_forward.1} parent=1 // pred_check
      _
    $region11: #{gr_model_forward.1} parent=1 // pred_check_branch
      %18 = sbr.rel (0) target = $region13
    $region12: #{gr_model_forward.1} parent=1 // pred_region
      _
    $region13: #{gr_model_forward.1} parent=1 // pred_fallthru
      _
    // Predicated region
    $region14: #{gr_model_forward.1} parent=1 // pred_check
      _
    $region15: #{gr_model_forward.1} parent=1 // pred_check_branch
      %20 = sbr.rel (0) target = $region17
    $region16: #{gr_model_forward.1} parent=1 // pred_region
      _
    $region17: #{gr_model_forward.1} parent=1 // pred_fallthru
      _
    // Predicated region
    $region18: #{gr_model_forward.1} parent=1 // pred_check
      _
    $region19: #{gr_model_forward.1} parent=1 // pred_check_branch
      %22 = sbr.rel (0) target = $region21
    $region20: #{gr_model_forward.1} parent=1 // pred_region
      _
    $region21: #{gr_model_forward.1} parent=1 // pred_fallthru
      _
    // Predicated region
    $region22: #{gr_model_forward.1} parent=1 // pred_check
      _
    $region23: #{gr_model_forward.1} parent=1 // pred_check_branch
      %24 = sbr.rel (0) target = $region25
    $region24: #{gr_model_forward.1} parent=1 // pred_region
      _
    $region25: #{gr_model_forward.1} parent=1 // pred_fallthru
      _
    // Predicated region
    $region26: #{gr_model_forward.1} parent=1 // pred_check
      _
    $region27: #{gr_model_forward.1} parent=1 // pred_check_branch
      %26 = sbr.rel (0) target = $region29
    $region28: #{gr_model_forward.1} parent=1 // pred_region
      _
    $region29: #{gr_model_forward.1} parent=1 // pred_fallthru
      _
    %v28 = vld [vmem:[%s0] sm:$0xff]
    %v29 = vpack.c.bf16 %v28, %v28
    %v30 = vld [vmem:[%s1] sm:$0xf]
    %v31 = vld [vmem:[%s1 + $0x4] sm:$0xf]
    %v32 = vld [vmem:[%s1 + $0x8] sm:$0xf]
    %v33 = vld [vmem:[%s1 + $0xc] sm:$0xf]
    %v34 = vld [vmem:[%s1 + $0x10] sm:$0xf]
    %v35 = vld [vmem:[%s1 + $0x14] sm:$0xf]
    %v36 = vld [vmem:[%s1 + $0x18] sm:$0xf]
    %v37 = vld [vmem:[%s1 + $0x1c] sm:$0xf]
    %v38 = vld [vmem:[%s1 + $0x20] sm:$0xf]
    %v39 = vld [vmem:[%s1 + $0x24] sm:$0xf]
    %v40 = vld [vmem:[%s1 + $0x28] sm:$0xf]
    %v41 = vld [vmem:[%s1 + $0x2c] sm:$0xf]
    %v42 = vld [vmem:[%s1 + $0x30] sm:$0xf]
    %v43 = vld [vmem:[%s1 + $0x34] sm:$0xf]
    %v44 = vld [vmem:[%s1 + $0x38] sm:$0xf]
    %v45 = vld [vmem:[%s1 + $0x3c] sm:$0xf]
    %v46 = vld [vmem:[%s2] sm:$0x1]
    %v48 = vlaneseq
    %v49 = vshrl.u32 %v48, 7
    %v50 = vsub.s32 0, %v49
    %v51 = vrot.slane %v46, %v50
    %v69 = vunpack.c.l.b16 %v30
    %v70 = vunpack.c.l.b16 %v31
    %v71 = vunpack.c.l.b16 %v32
    %v72 = vunpack.c.l.b16 %v33
    %v73 = vunpack.c.l.b16 %v34
    %v74 = vunpack.c.l.b16 %v35
    %v75 = vunpack.c.l.b16 %v36
    %v76 = vunpack.c.l.b16 %v37
    %v77 = vunpack.c.l.b16 %v38
    %v78 = vunpack.c.l.b16 %v39
    %v79 = vunpack.c.l.b16 %v40
    %v80 = vunpack.c.l.b16 %v41
    %v81 = vunpack.c.l.b16 %v42
    %v82 = vunpack.c.l.b16 %v43
    %v83 = vunpack.c.l.b16 %v44
    %v84 = vunpack.c.l.b16 %v45
    %v85 = vpack.c.b16 %v70, %v69
    %v86 = vpack.c.b16 %v72, %v71
    %v87 = vpack.c.b16 %v74, %v73
    %v88 = vpack.c.b16 %v76, %v75
    %v89 = vpack.c.b16 %v78, %v77
    %v90 = vpack.c.b16 %v80, %v79
    %v91 = vpack.c.b16 %v82, %v81
    %v92 = vpack.c.b16 %v84, %v83
    %vm100 = vcmask 1039360
    %v102 = vsel %vm100, %v29, 0
    %vm104 = vcmask 1046528
    %vm105 = vcmask 1047552
    %v106 = vsel %vm104, 4294967295, 65535
    %v107 = vsel %vm105, %v106, 0
    %v109 = vand.u32 %v92, %v107
    %111 = vmatprep.subr.bf16.mxu0 0
    %112 = vmatpush1.bf16.msra.mxu0 %v85
    %113 = vmatprep.subr.bf16.mxu0 0
    %114 = vmatpush1.bf16.msra.mxu0 %v86
    %115 = vmatprep.subr.bf16.mxu0 0
    %116 = vmatpush1.bf16.msra.mxu0 %v87
    %117 = vmatprep.subr.bf16.mxu0 0
    %118 = vmatpush1.bf16.msra.mxu0 %v88
    %119 = vmatprep.subr.bf16.mxu0 0
    %120 = vmatpush1.bf16.msra.mxu0 %v89
    %121 = vmatprep.subr.bf16.mxu0 0
    %122 = vmatpush1.bf16.msra.mxu0 %v90
    %123 = vmatprep.subr.bf16.mxu0 0
    %124 = vmatpush1.bf16.msra.mxu0 %v91
    %125 = vmatprep.subr.bf16.mxu0 0
    %126 = vmatpush1.bf16.msra.mxu0 %v109
    %127 = vmatprep.subr.bf16.mxu0 0
    %128 = vmatpush1.bf16.msra.mxu0 0
    %129 = vmatprep.subr.bf16.mxu0 0
    %130 = vmatpush1.bf16.msra.mxu0 0
    %131 = vmatprep.subr.bf16.mxu0 0
    %132 = vmatpush1.bf16.msra.mxu0 0
    %133 = vmatprep.subr.bf16.mxu0 0
    %134 = vmatpush1.bf16.msra.mxu0 0
    %135 = vmatprep.subr.bf16.mxu0 0
    %136 = vmatpush1.bf16.msra.mxu0 0
    %137 = vmatprep.subr.bf16.mxu0 0
    %138 = vmatpush1.bf16.msra.mxu0 0
    %139 = vmatprep.subr.bf16.mxu0 0
    %140 = vmatpush1.bf16.msra.mxu0 0
    %141 = vmatprep.subr.bf16.mxu0 0
    %142 = vmatpush1.bf16.msra.mxu0 0
    %143 = vmatprep.mubr.bf16.mxu0 0
    %144 = vmatmul.mubr.bf16.gmra.mrb[0].mxu0 %v102
    %v145 = vpop.f32.mrb[0].mxu0
    %v146 = vadd.f32 %v51, %v145
    %v147 = vpop.f32.mrb[0].mxu0
    %v148 = vpop.f32.mrb[0].mxu0
    %v149 = vpop.f32.mrb[0].mxu0
    %150 = vdwg.mxu0
    %v151 = vmax.f32 %v146, 0.0
    %v152 = vpack.c.bf16 %v151, %v151
    %v153 = vld [vmem:[%s3] sm:$0xf]
    %v154 = vld [vmem:[%s3 + $0x4] sm:$0xf]
    %v155 = vld [vmem:[%s3 + $0x8] sm:$0xf]
    %v156 = vld [vmem:[%s3 + $0xc] sm:$0xf]
    %v157 = vld [vmem:[%s3 + $0x10] sm:$0xf]
    %v158 = vld [vmem:[%s3 + $0x14] sm:$0xf]
    %v159 = vld [vmem:[%s3 + $0x18] sm:$0xf]
    %v160 = vld [vmem:[%s3 + $0x1c] sm:$0xf]
    %v161 = vld [vmem:[%s3 + $0x20] sm:$0xf]
    %v162 = vld [vmem:[%s3 + $0x24] sm:$0xf]
    %v163 = vld [vmem:[%s3 + $0x28] sm:$0xf]
    %v164 = vld [vmem:[%s3 + $0x2c] sm:$0xf]
    %v165 = vld [vmem:[%s3 + $0x30] sm:$0xf]
    %v166 = vld [vmem:[%s3 + $0x34] sm:$0xf]
    %v167 = vld [vmem:[%s3 + $0x38] sm:$0xf]
    %v168 = vld [vmem:[%s3 + $0x3c] sm:$0xf]
    %v169 = vld [vmem:[%s4] sm:$0x1]
    %v171 = vlaneseq
    %v172 = vshrl.u32 %v171, 7
    %v173 = vsub.s32 0, %v172
    %v174 = vrot.slane %v169, %v173
    %v192 = vunpack.c.l.b16 %v153
    %v193 = vunpack.c.l.b16 %v154
    %v194 = vunpack.c.l.b16 %v155
    %v195 = vunpack.c.l.b16 %v156
    %v196 = vunpack.c.l.b16 %v157
    %v197 = vunpack.c.l.b16 %v158
    %v198 = vunpack.c.l.b16 %v159
    %v199 = vunpack.c.l.b16 %v160
    %v200 = vunpack.c.l.b16 %v161
    %v201 = vunpack.c.l.b16 %v162
    %v202 = vunpack.c.l.b16 %v163
    %v203 = vunpack.c.l.b16 %v164
    %v204 = vunpack.c.l.b16 %v165
    %v205 = vunpack.c.l.b16 %v166
    %v206 = vunpack.c.l.b16 %v167
    %v207 = vunpack.c.l.b16 %v168
    %v208 = vpack.c.b16 %v193, %v192
    %v209 = vpack.c.b16 %v195, %v194
    %v210 = vpack.c.b16 %v197, %v196
    %v211 = vpack.c.b16 %v199, %v198
    %v212 = vpack.c.b16 %v201, %v200
    %v213 = vpack.c.b16 %v203, %v202
    %v214 = vpack.c.b16 %v205, %v204
    %v215 = vpack.c.b16 %v207, %v206
    %224 = vmatprep.subr.bf16.mxu0 0
    %225 = vmatpush1.bf16.msra.mxu0 %v208
    %226 = vmatprep.subr.bf16.mxu0 0
    %227 = vmatpush1.bf16.msra.mxu0 %v209
    %228 = vmatprep.subr.bf16.mxu0 0
    %229 = vmatpush1.bf16.msra.mxu0 %v210
    %230 = vmatprep.subr.bf16.mxu0 0
    %231 = vmatpush1.bf16.msra.mxu0 %v211
    %232 = vmatprep.subr.bf16.mxu0 0
    %233 = vmatpush1.bf16.msra.mxu0 %v212
    %234 = vmatprep.subr.bf16.mxu0 0
    %235 = vmatpush1.bf16.msra.mxu0 %v213
    %236 = vmatprep.subr.bf16.mxu0 0
    %237 = vmatpush1.bf16.msra.mxu0 %v214
    %238 = vmatprep.subr.bf16.mxu0 0
    %239 = vmatpush1.bf16.msra.mxu0 %v215
    %240 = vmatprep.subr.bf16.mxu0 0
    %241 = vmatpush1.bf16.msra.mxu0 0
    %242 = vmatprep.subr.bf16.mxu0 0
    %243 = vmatpush1.bf16.msra.mxu0 0
    %244 = vmatprep.subr.bf16.mxu0 0
    %245 = vmatpush1.bf16.msra.mxu0 0
    %246 = vmatprep.subr.bf16.mxu0 0
    %247 = vmatpush1.bf16.msra.mxu0 0
    %248 = vmatprep.subr.bf16.mxu0 0
    %249 = vmatpush1.bf16.msra.mxu0 0
    %250 = vmatprep.subr.bf16.mxu0 0
    %251 = vmatpush1.bf16.msra.mxu0 0
    %252 = vmatprep.subr.bf16.mxu0 0
    %253 = vmatpush1.bf16.msra.mxu0 0
    %254 = vmatprep.subr.bf16.mxu0 0
    %255 = vmatpush1.bf16.msra.mxu0 0
    %256 = vmatprep.mubr.bf16.mxu0 0
    %257 = vmatmul.mubr.bf16.gmra.mrb[0].mxu0 %v152
    %v258 = vpop.f32.mrb[0].mxu0
    %v259 = vadd.f32 %v174, %v258
    %v260 = vpop.f32.mrb[0].mxu0
    %v261 = vpop.f32.mrb[0].mxu0
    %v262 = vpop.f32.mrb[0].mxu0
    %263 = vdwg.mxu0
    %v264 = vmax.f32 %v259, 0.0
    %v265 = vpack.c.bf16 %v264, %v264
    %v266 = vld [vmem:[%s5] sm:$0xf]
    %v267 = vld [vmem:[%s5 + $0x4] sm:$0xf]
    %v268 = vld [vmem:[%s5 + $0x8] sm:$0xf]
    %v269 = vld [vmem:[%s5 + $0xc] sm:$0xf]
    %v270 = vld [vmem:[%s5 + $0x10] sm:$0xf]
    %v271 = vld [vmem:[%s5 + $0x14] sm:$0xf]
    %v272 = vld [vmem:[%s5 + $0x18] sm:$0xf]
    %v273 = vld [vmem:[%s5 + $0x1c] sm:$0xf]
    %v274 = vld [vmem:[%s6] sm:$0x1]
    %v276 = vlaneseq
    %v277 = vshrl.u32 %v276, 7
    %v278 = vsub.s32 0, %v277
    %v279 = vrot.slane %v274, %v278
    %v289 = vunpack.c.l.b16 %v266
    %v290 = vunpack.c.l.b16 %v267
    %v291 = vunpack.c.l.b16 %v268
    %v292 = vunpack.c.l.b16 %v269
    %v293 = vunpack.c.l.b16 %v270
    %v294 = vunpack.c.l.b16 %v271
    %v295 = vunpack.c.l.b16 %v272
    %v296 = vunpack.c.l.b16 %v273
    %v297 = vpack.c.b16 %v290, %v289
    %v298 = vpack.c.b16 %v292, %v291
    %v299 = vpack.c.b16 %v294, %v293
    %v300 = vpack.c.b16 %v296, %v295
    %vm305 = vcmask 523264
    %v307 = vsel %vm305, %v265, 0
    %309 = vmatprep.subr.bf16.mxu0 0
    %310 = vmatpush1.bf16.msra.mxu0 %v297
    %311 = vmatprep.subr.bf16.mxu0 0
    %312 = vmatpush1.bf16.msra.mxu0 %v298
    %313 = vmatprep.subr.bf16.mxu0 0
    %314 = vmatpush1.bf16.msra.mxu0 %v299
    %315 = vmatprep.subr.bf16.mxu0 0
    %316 = vmatpush1.bf16.msra.mxu0 %v300
    %317 = vmatprep.subr.bf16.mxu0 0
    %318 = vmatpush1.bf16.msra.mxu0 0
    %319 = vmatprep.subr.bf16.mxu0 0
    %320 = vmatpush1.bf16.msra.mxu0 0
    %321 = vmatprep.subr.bf16.mxu0 0
    %322 = vmatpush1.bf16.msra.mxu0 0
    %323 = vmatprep.subr.bf16.mxu0 0
    %324 = vmatpush1.bf16.msra.mxu0 0
    %325 = vmatprep.subr.bf16.mxu0 0
    %326 = vmatpush1.bf16.msra.mxu0 0
    %327 = vmatprep.subr.bf16.mxu0 0
    %328 = vmatpush1.bf16.msra.mxu0 0
    %329 = vmatprep.subr.bf16.mxu0 0
    %330 = vmatpush1.bf16.msra.mxu0 0
    %331 = vmatprep.subr.bf16.mxu0 0
    %332 = vmatpush1.bf16.msra.mxu0 0
    %333 = vmatprep.subr.bf16.mxu0 0
    %334 = vmatpush1.bf16.msra.mxu0 0
    %335 = vmatprep.subr.bf16.mxu0 0
    %336 = vmatpush1.bf16.msra.mxu0 0
    %337 = vmatprep.subr.bf16.mxu0 0
    %338 = vmatpush1.bf16.msra.mxu0 0
    %339 = vmatprep.subr.bf16.mxu0 0
    %340 = vmatpush1.bf16.msra.mxu0 0
    %341 = vmatprep.mubr.bf16.mxu0 0
    %342 = vmatmul.mubr.bf16.gmra.mrb[0].mxu0 %v307
    %v343 = vpop.f32.mrb[0].mxu0
    %v344 = vadd.f32 %v279, %v343
    %v345 = vpop.f32.mrb[0].mxu0
    %v346 = vpop.f32.mrb[0].mxu0
    %v347 = vpop.f32.mrb[0].mxu0
    %348 = vdwg.mxu0
    %349 = vmax.xlane.f32.xlu0 %v344
    %v350 = vpop.xlane.xlu0 %349
    %v351 = vsub.f32 %v344, %v350
    %v352 = vmul.f32 %v351, 1.442695
    %v353 = vpow.pop %v352
    %354 = vadd.xlane.f32.xlu0 %v353
    %v355 = vpop.xlane.xlu0 %354
    %v356 = vrcp.pop %v355
    %v357 = vmul.f32 %v353, %v356
    %vm358 = vcmask 80896
    %359 = vst.msk [vmem:[#allocation2] sm:$0xff] %vm358, %v357
    // Predicated region
    $region30: #{gr_model_forward.1} parent=1 // pred_check
      _
    $region31: #{gr_model_forward.1} parent=1 // pred_check_branch
      %361 = sbr.rel (0) target = $region33
    $region32: #{gr_model_forward.1} parent=1 // pred_region
      %s363 = ssub.s32 128, 128
      %364 = vsyncadd [#allocation3], %s363
      %s366 = sshll.u32 [#allocation2], 4
      %s367 = int_to_ptr.vmem [resolvable:$true] %s366
      %369 = dma.vmem_to_hbm [thread:$0]  %s367, 128, %s7, [#allocation3]
    $region33: #{gr_model_forward.1} parent=1 // pred_fallthru
      _
    // Predicated region
    $region34: #{gr_model_forward.1} parent=1 // pred_check
      _
    $region35: #{gr_model_forward.1} parent=1 // pred_check_branch
      %371 = sbr.rel (0) target = $region37
    $region36: #{gr_model_forward.1} parent=1 // pred_region
      %372 = dma.done [#allocation3], 128
    $region37: #{gr_model_forward.1} parent=1 // pred_fallthru
      _
    %373 = vsyncpa [#allocation3], 1

</llo_original>
